<compile_context>
chip_gen: v7x
topology: tpu7x:2x2x1
jax: 0.10.0
libtpu: 0.0.40
codegen_flags: <defaults>
</compile_context>

<pallas_src>
import jax
import jax.numpy as jnp
from jax.experimental import pallas as pl
from jax.experimental.pallas import tpu as pltpu

_LANES = 128


def _cdiv(a, b):
    return -(-a // b)


def _tpu_config():
    """Returns (tensorcores_per_device, target_block_bytes). Conservative fallback."""
    kind = ""
    try:
        kind = jax.devices()[0].device_kind.lower()
    except Exception:
        pass
    if "7" in kind:
        # v7x: 2 TensorCores/chip, ~3.2 TB/s HBM -> big blocks + core split.
        return 2, 4 << 20
    if "v6" in kind or "6e" in kind:
        # v6e: single TC, 32 MiB scoped-VMEM default.
        return 1, 4 << 20
    # v5e and unknown chips: 16 MiB scoped-VMEM default -> keep 2 MiB blocks.
    return 1, 2 << 20


def _make_sse_kernel(tile_rows, steps, valid_rows, needs_mask):
    """Builds a kernel accumulating a per-core (8,128) vreg of partial SSE."""

    def kernel(yhat_ref, y_ref, out_ref):
        c = pl.program_id(0)   # core-split axis (parallel / core_parallel)
        i = pl.program_id(1)   # reduction axis (arbitrary)

        @pl.when(i == 0)
        def _init():
            out_ref[...] = jnp.zeros_like(out_ref)

        def accumulate(masked):
            # Upcast under the DMA; pure VPU work.
            d = yhat_ref[...].astype(jnp.float32) - y_ref[...].astype(jnp.float32)
            if masked:
                start_row = (c * steps + i) * tile_rows
                row_ids = jax.lax.broadcasted_iota(
                    jnp.int32, (tile_rows, _LANES), 0)
                d = jnp.where(row_ids < (valid_rows - start_row), d, 0.0)
            # (R,128) -> (R/8,8,128) maps exactly onto vregs; the axis-0 sum
            # is vreg-wise adds (no XLU) into the resident accumulator.
            out_ref[...] += jnp.sum((d * d).reshape(-1, 8, _LANES),
                                    axis=0)[None, :, :]

        if needs_mask:
            start_row = (c * steps + i) * tile_rows
            is_full = start_row + tile_rows <= valid_rows

            @pl.when(is_full)
            def _fast():
                accumulate(False)

            @pl.when(jnp.logical_not(is_full))
            def _ragged():
                accumulate(True)
        else:
            accumulate(False)

    return kernel


def _sum_squared_error_2d(yhat2, y2, *, tile_rows_hint=None):
    """Streams a (rows,128) pair through VMEM, returns sum((yhat2-y2)**2) as f32."""
    rows = int(yhat2.shape[0])
    itemsize = int(jnp.dtype(yhat2.dtype).itemsize)
    # Sublane tiling: f32 -> 8, bf16 -> 16, int8 -> 32.
    row_align = max(8, 32 // max(1, itemsize))

    cores, target_block_bytes = _tpu_config()
    target_rows = max(row_align,
                      (target_block_bytes // (_LANES * itemsize))
                      // row_align * row_align)
    if tile_rows_hint is not None:
        target_rows = max(row_align, (int(tile_rows_hint) // row_align) * row_align)
    # Never let a block exceed the array's row extent (caller guarantees
    # rows >= row_align).
    tile_rows = min(target_rows, (rows // row_align) * row_align)

    total_blocks = _cdiv(rows, tile_rows)
    num_splits = 2 if (cores >= 2 and total_blocks >= 2) else 1
    steps = _cdiv(total_blocks, num_splits)
    # Masking is needed iff the covered row span exceeds the real row count
    # (ragged final tile and/or redundant clamped blocks on the split core).
    needs_mask = (num_splits * steps * tile_rows) != rows

    if num_splits * steps == total_blocks:
        in_index = lambda c, i: (c * steps + i, 0)
    else:
        # Extra (fully out-of-range) steps on the last core re-read the final
        # in-bounds block; the in-kernel mask zeroes their contribution.
        in_index = lambda c, i: (jnp.minimum(c * steps + i, total_blocks - 1), 0)

    block_bytes = tile_rows * _LANES * itemsize
    dims = (pltpu.CORE_PARALLEL if num_splits == 2 else pltpu.ARBITRARY,
            pltpu.ARBITRARY)

    partials = pl.pallas_call(
        _make_sse_kernel(tile_rows, steps, rows, needs_mask),
        out_shape=jax.ShapeDtypeStruct((num_splits, 8, _LANES), jnp.float32),
        grid=(num_splits, steps),
        in_specs=[pl.BlockSpec((tile_rows, _LANES), in_index),
                  pl.BlockSpec((tile_rows, _LANES), in_index)],
        # Per-core resident accumulator block; written back once per core.
        out_specs=pl.BlockSpec((1, 8, _LANES), lambda c, i: (c, 0, 0)),
        compiler_params=pltpu.CompilerParams(
            dimension_semantics=dims,
            # 2 inputs x 2 pipeline buffers + output + headroom.
            vmem_limit_bytes=int(4 * block_bytes + (4 << 20))),
        cost_estimate=pl.CostEstimate(
            flops=3 * rows * _LANES,
            transcendentals=0,
            bytes_accessed=2 * rows * _LANES * itemsize
                           + num_splits * 8 * _LANES * 4),
    )(yhat2, y2)

    return jnp.sum(partials)


def mse_loss_with_sparsity_regularizer(yhat, y, s_params, alpha, *, tile_rows=None):
    """yhat, y: same-shape tensors (e.g. NCHW). s_params: 1-D array of the
    model's scalar 's_' weights. Returns shape-(1,) f32 loss."""
    assert yhat.shape == y.shape
    n_elems = int(yhat.size)

    itemsize = int(jnp.dtype(yhat.dtype).itemsize)
    row_align = max(8, 32 // max(1, itemsize))

    rows_main = n_elems // _LANES
    n_main = rows_main * _LANES

    sse = jnp.float32(0.0)
    if rows_main >= row_align:
        if n_main == n_elems:
            # Element count is a multiple of 128: zero-copy (bitcast) reshape.
            yhat2 = yhat.reshape(rows_main, _LANES)
            y2 = y.reshape(rows_main, _LANES)
            tail_yhat = tail_y = None
        else:
            # Ragged lane tail (< 128 elems): kernel covers the 128-aligned
            # prefix, tail reduced in plain JAX below.  (The prefix slice may
            # materialize a copy; still far cheaper than padding both inputs
            # to a tile multiple.)
            yhat_f = yhat.reshape(-1)
            y_f = y.reshape(-1)
            yhat2 = yhat_f[:n_main].reshape(rows_main, _LANES)
            y2 = y_f[:n_main].reshape(rows_main, _LANES)
            tail_yhat = yhat_f[n_main:]
            tail_y = y_f[n_main:]
        sse = _sum_squared_error_2d(yhat2, y2, tile_rows_hint=tile_rows)
        if tail_yhat is not None:
            dt = tail_yhat.astype(jnp.float32) - tail_y.astype(jnp.float32)
            sse = sse + jnp.sum(dt * dt)
    elif n_elems > 0:
        # Tiny tensor (< row_align*128 elems): not worth a kernel launch.
        d = yhat.astype(jnp.float32) - y.astype(jnp.float32)
        sse = jnp.sum(d * d)

    mse = sse / jnp.float32(n_elems) if n_elems > 0 else jnp.float32(0.0)
    reg = (jnp.sum(jnp.abs(s_params.astype(jnp.float32)))
           if s_params.size else jnp.float32(0.0))
    return (mse + jnp.float32(alpha) * reg).reshape(1).astype(jnp.float32)


if __name__ == "__main__":
    key = jax.random.PRNGKey(0)
    k1, k2, k3, k4 = jax.random.split(key, 4)

    # Small NCHW shape consistent with the module's usage (2048 elems -> 16 rows).
    B, C, H, W = 2, 4, 16, 16
    yhat = jax.random.normal(k1, (B, C, H, W), jnp.float32)
    y = jax.random.normal(k2, (B, C, H, W), jnp.float32)

    # Deterministic synthetic 's_' scalar parameters of the model.
    s_params = jnp.array([0.5, -1.25, 0.75], jnp.float32)
    alpha = 0.01

    loss = jax.block_until_ready(
        mse_loss_with_sparsity_regularizer(yhat, y, s_params, alpha))
    ref = jnp.mean((yhat - y) ** 2) + alpha * jnp.sum(jnp.abs(s_params))
    assert loss.shape == (1,) and loss.dtype == jnp.float32
    assert jnp.allclose(loss[0], ref, rtol=1e-5, atol=1e-6)

    # Lane-misaligned shape (2805 elems): kernel covers the 21 aligned rows
    # (last tile masked in-kernel), wrapper reduces the 117-element tail.
    yhat2 = jax.random.normal(k3, (3, 5, 17, 11), jnp.float32)
    y2 = jax.random.normal(k4, (3, 5, 17, 11), jnp.float32)
    loss2 = jax.block_until_ready(
        mse_loss_with_sparsity_regularizer(yhat2, y2, s_params, alpha))
    ref2 = jnp.mean((yhat2 - y2) ** 2) + alpha * jnp.sum(jnp.abs(s_params))
    assert jnp.allclose(loss2[0], ref2, rtol=1e-5, atol=1e-6)

    # Multi-step accumulation across the inner (arbitrary) grid axis.
    loss3 = jax.block_until_ready(
        mse_loss_with_sparsity_regularizer(yhat, y, s_params, alpha, tile_rows=8))
    assert jnp.allclose(loss3[0], ref, rtol=1e-5, atol=1e-6)

    print("KERNEL_OK")
</pallas_src>

<mosaic_0001>
module attributes {stable_mosaic.version = 11 : i64} {
  func.func @kernel(%arg0: i32, %arg1: i32, %arg2: memref<16x128xf32, #tpu.memory_space<vmem>>, %arg3: memref<16x128xf32, #tpu.memory_space<vmem>>, %arg4: memref<1x8x128xf32, #tpu.memory_space<vmem>>) attributes {dimension_semantics = [#tpu.dimension_semantics<arbitrary>, #tpu.dimension_semantics<arbitrary>], iteration_bounds = array<i64: 1, 1>, scalar_prefetch = 0 : i64, scratch_operands = 0 : i64, tpu.core_type = #tpu.core_type<tc>, window_params = [{transform_indices = @transform_0, window_bounds = array<i64: 16, 128>}, {transform_indices = @transform_1, window_bounds = array<i64: 16, 128>}, {transform_indices = @transform_2, window_bounds = array<i64: 1, 8, 128>}]} {
    %c0_i32 = arith.constant 0 : i32
    %0 = arith.cmpi eq, %arg1, %c0_i32 : i32
    %1 = arith.extui %0 : i1 to i32
    %c0_i32_0 = arith.constant 0 : i32
    %2 = arith.cmpi ne, %1, %c0_i32_0 : i32
    scf.if %2 {
      %cst_10 = arith.constant 0.000000e+00 : f32
      %13 = vector.broadcast %cst_10 : f32 to vector<1x8x128xf32>
      %c0_11 = arith.constant 0 : index
      %c0_12 = arith.constant 0 : index
      %c0_13 = arith.constant 0 : index
      %14 = vector.load %arg4[%c0_11, %c0_12, %c0_13] : memref<1x8x128xf32, #tpu.memory_space<vmem>>, vector<1x8x128xf32>
      tpu.vector_store %arg4[%c0_11, %c0_12, %c0_13], %13 {strides = array<i32>} : memref<1x8x128xf32, #tpu.memory_space<vmem>>, vector<1x8x128xf32>,
    } else {
    }
    %c0 = arith.constant 0 : index
    %c0_1 = arith.constant 0 : index
    %3 = vector.load %arg2[%c0, %c0_1] : memref<16x128xf32, #tpu.memory_space<vmem>>, vector<16x128xf32>
    %c0_2 = arith.constant 0 : index
    %c0_3 = arith.constant 0 : index
    %4 = vector.load %arg3[%c0_2, %c0_3] : memref<16x128xf32, #tpu.memory_space<vmem>>, vector<16x128xf32>
    %5 = arith.subf %3, %4 : vector<16x128xf32>
    %c0_4 = arith.constant 0 : index
    %c0_5 = arith.constant 0 : index
    %c0_6 = arith.constant 0 : index
    %6 = vector.load %arg4[%c0_4, %c0_5, %c0_6] : memref<1x8x128xf32, #tpu.memory_space<vmem>>, vector<1x8x128xf32>
    %7 = arith.mulf %5, %5 : vector<16x128xf32>
    %8 = vector.shape_cast %7 : vector<16x128xf32> to vector<2x8x128xf32>
    %cst = arith.constant dense<0.000000e+00> : vector<8x128xf32>
    %9 = vector.multi_reduction <add>, %8, %cst [0] : vector<2x8x128xf32> to vector<8x128xf32>
    %10 = vector.shape_cast %9 : vector<8x128xf32> to vector<1x8x128xf32>
    %11 = arith.addf %6, %10 : vector<1x8x128xf32>
    %c0_7 = arith.constant 0 : index
    %c0_8 = arith.constant 0 : index
    %c0_9 = arith.constant 0 : index
    %12 = vector.load %arg4[%c0_7, %c0_8, %c0_9] : memref<1x8x128xf32, #tpu.memory_space<vmem>>, vector<1x8x128xf32>
    tpu.vector_store %arg4[%c0_7, %c0_8, %c0_9], %11 {strides = array<i32>} : memref<1x8x128xf32, #tpu.memory_space<vmem>>, vector<1x8x128xf32>,
    return
  }
  func.func @transform_0(%arg0: i32, %arg1: i32) -> (i32, i32) {
    %c1_i32 = arith.constant 1 : i32
    %0 = arith.muli %arg0, %c1_i32 : i32
    %1 = arith.addi %0, %arg1 : i32
    %c0_i32 = arith.constant 0 : i32
    %c0_i32_0 = arith.constant 0 : i32
    return %1, %c0_i32 : i32, i32
  }
  func.func @transform_1(%arg0: i32, %arg1: i32) -> (i32, i32) {
    %c1_i32 = arith.constant 1 : i32
    %0 = arith.muli %arg0, %c1_i32 : i32
    %1 = arith.addi %0, %arg1 : i32
    %c0_i32 = arith.constant 0 : i32
    %c0_i32_0 = arith.constant 0 : i32
    return %1, %c0_i32 : i32, i32
  }
  func.func @transform_2(%arg0: i32, %arg1: i32) -> (i32, i32, i32) {
    %c0_i32 = arith.constant 0 : i32
    %c0_i32_0 = arith.constant 0 : i32
    %c0_i32_1 = arith.constant 0 : i32
    return %arg0, %c0_i32, %c0_i32_0 : i32, i32, i32
  }
}

</mosaic_0001>

<llo_original>
// kernel: tpu_custom_call.1
$region0: #{tpu_custom_call.1}
  #allocation0 [shape = 'u32[]', space=smem, size = 0x4, offset = 0x4, fixed_abs, tag = 'smem constant byte address 0x4 - core index']
  #allocation1 [shape = 'u32[144,128]{1,0:T(1,128)}', space=vmem, size = 0x12000, scoped, tag = 'internal scratch']
  %s0 = inlined_call_operand.hbm [shape: f32[16,128], index: 0, kind: input, shape index: {}]
  %s1 = inlined_call_operand.hbm [shape: f32[16,128], index: 1, kind: input, shape index: {}]
  %s2 = inlined_call_operand.hbm [shape: f32[1,8,128], index: 2, kind: output, shape index: {}]
  %s3 = sld [smem:[#allocation0]]
  $region30: #{tpu_custom_call.1} parent=0
    _
  %s5 = ssub.s32 1, %s3
  %s6 = scalar_select 0, %s5, %s3
  $region1: #{tpu_custom_call.1} parent=0
    #allocation2 [shape = 'u8[8192]{0}', space=vmem, size = 0x2000, scoped, tag = 'input window, operand 0, single buffered']
    #allocation3 [shape = 's32[1]{0}', space=sflag, size = 0x4, scoped, tag = 'scoped memory for tpu_custom_call.1']
    #allocation4 [shape = 's32[1]{0}', space=sflag, size = 0x4, scoped, tag = 'scoped memory for tpu_custom_call.1']
    #allocation5 [shape = 'u8[8192]{0}', space=vmem, size = 0x2000, scoped, tag = 'input window, operand 1, single buffered']
    #allocation6 [shape = 's32[1]{0}', space=sflag, size = 0x4, scoped, tag = 'scoped memory for tpu_custom_call.1']
    #allocation7 [shape = 'u8[4096]{0}', space=vmem, size = 0x1000, scoped, tag = 'output window, operand 0, single buffered']
    %7 = vsyncpa [#allocation3], 0
    %8 = vsyncpa [#allocation6], 0
    %9 = vsyncpa [#allocation4], 0
    // Predicated region
    $region2: #{tpu_custom_call.1} parent=1 // pred_check
      _
    $region3: #{tpu_custom_call.1} parent=1 // pred_check_branch
      %11 = sbr.rel (0) target = $region5
    $region4: #{tpu_custom_call.1} parent=1 // pred_region
      %s12 = sadd.s32 0, 0
      %s13 = smul.u32 2, %s12
      %s15 = ssub.s32 256, 256
      %16 = vsyncadd [#allocation3], %s15
      %s17 = smul.addr %s13, 128
      %s18 = scalar_lea.hbm %s0, %s17
      %s19 = sshll.u32 [#allocation2], 4
      %s20 = int_to_ptr.vmem [resolvable:$true] %s19
      %25 = dma.hbm_to_vmem [thread:$0]  %s18, 256, %s20, [#allocation3], 128, 128, 8
    $region5: #{tpu_custom_call.1} parent=1 // pred_fallthru
      _
    // Predicated region
    $region6: #{tpu_custom_call.1} parent=1 // pred_check
      _
    $region7: #{tpu_custom_call.1} parent=1 // pred_check_branch
      %27 = sbr.rel (0) target = $region9
    $region8: #{tpu_custom_call.1} parent=1 // pred_region
      %s28 = sadd.s32 0, 0
      %s29 = smul.u32 2, %s28
      %s31 = ssub.s32 256, 256
      %32 = vsyncadd [#allocation6], %s31
      %s33 = smul.addr %s29, 128
      %s34 = scalar_lea.hbm %s1, %s33
      %s35 = sshll.u32 [#allocation5], 4
      %s36 = int_to_ptr.vmem [resolvable:$true] %s35
      %41 = dma.hbm_to_vmem [thread:$0]  %s34, 256, %s36, [#allocation6], 128, 128, 8
    $region9: #{tpu_custom_call.1} parent=1 // pred_fallthru
      _
    // Predicated region
    $region10: #{tpu_custom_call.1} parent=1 // pred_check
      _
    $region11: #{tpu_custom_call.1} parent=1 // pred_check_branch
      %43 = sbr.rel (0) target = $region13
    $region12: #{tpu_custom_call.1} parent=1 // pred_region
      %44 = dma.done [#allocation3], 256
    $region13: #{tpu_custom_call.1} parent=1 // pred_fallthru
      _
    // Predicated region
    $region14: #{tpu_custom_call.1} parent=1 // pred_check
      _
    $region15: #{tpu_custom_call.1} parent=1 // pred_check_branch
      %46 = sbr.rel (0) target = $region17
    $region16: #{tpu_custom_call.1} parent=1 // pred_region
      %47 = dma.done [#allocation6], 256
    $region17: #{tpu_custom_call.1} parent=1 // pred_fallthru
      _
    %s48 = sadd.s32 0, 0
    %s49 = smul.u32 2, %s48
    %s50 = sadd.s32 0, 0
    %s51 = smul.u32 2, %s50
    %p52 = scmp.eq.s32.totalorder 0, 0
    // Predicated region
    $region18: #{tpu_custom_call.1} parent=1 // pred_check
      %p53 = pneg %p52
    $region19: #{tpu_custom_call.1} parent=1 // pred_check_branch
      %55 = sbr.rel (%p53) target = $region21
    $region20: #{tpu_custom_call.1} parent=1 // pred_region
      %56 = vst [vmem:[#allocation7] sm:$0xff] 0.0
    $region21: #{tpu_custom_call.1} parent=1 // pred_fallthru
      _
    %v57 = vld [vmem:[#allocation2] sm:$0xff]
    %v58 = vld [vmem:[#allocation2 + $0x8] sm:$0xff]
    %v59 = vld [vmem:[#allocation5] sm:$0xff]
    %v60 = vld [vmem:[#allocation5 + $0x8] sm:$0xff]
    %v61 = vsub.f32 %v57, %v59
    %v62 = vsub.f32 %v58, %v60
    %v63 = vld [vmem:[#allocation7] sm:$0xff]
    %v64 = vmul.f32 %v61, %v61
    %v65 = vmul.f32 %v62, %v62
    %v66 = vadd.f32 %v64, %v65
    %v67 = vadd.f32 %v63, %v66
    %68 = vst [vmem:[#allocation7] sm:$0xff] %v67
    // Predicated region
    $region22: #{tpu_custom_call.1} parent=1 // pred_check
      _
    $region23: #{tpu_custom_call.1} parent=1 // pred_check_branch
      %70 = sbr.rel (0) target = $region25
    $region24: #{tpu_custom_call.1} parent=1 // pred_region
      %s72 = ssub.s32 128, 128
      %73 = vsyncadd [#allocation4], %s72
      %s75 = sshll.u32 [#allocation7], 4
      %s76 = int_to_ptr.vmem [resolvable:$true] %s75
      %78 = dma.vmem_to_hbm [thread:$0]  %s76, 128, %s2, [#allocation4]
    $region25: #{tpu_custom_call.1} parent=1 // pred_fallthru
      _
    // Predicated region
    $region26: #{tpu_custom_call.1} parent=1 // pred_check
      _
    $region27: #{tpu_custom_call.1} parent=1 // pred_check_branch
      %80 = sbr.rel (0) target = $region29
    $region28: #{tpu_custom_call.1} parent=1 // pred_region
      %81 = dma.done [#allocation4], 128
    $region29: #{tpu_custom_call.1} parent=1 // pred_fallthru
      _
    %82 = vsyncpa [#allocation3], 1
    %83 = vsyncpa [#allocation6], 1
    %84 = vsyncpa [#allocation4], 1

</llo_original>
